<compile_context>
chip_gen: v7x
topology: tpu7x:2x2x1
jax: 0.10.0
libtpu: 0.0.40
codegen_flags: <defaults>
</compile_context>

<pallas_src>
import jax
import jax.numpy as jnp
from jax.experimental import pallas as pl
from jax.experimental.pallas import tpu as pltpu

HIDDEN = 64


def valnet_kernel(x_ref, w1_ref, b1_ref, w2_ref, b2_ref,
                  w3_ref, b3_ref, w4_ref, b4_ref, o_ref):
    """One batch tile: x_ref (S, TB) bf16 -> o_ref (1, TB) f32."""
    bf = jnp.bfloat16
    f32 = jnp.float32
    # fc1 + relu: (64, S)bf16 @ (S, TB)bf16 -> (64, TB) f32 accumulation.
    h = jnp.dot(w1_ref[...], x_ref[...], preferred_element_type=f32) + b1_ref[...]
    h = jnp.maximum(h, 0.0)
    # fc2 + relu (weights pre-cast bf16; activations cast at the dot only).
    h = jnp.dot(w2_ref[...], h.astype(bf), preferred_element_type=f32) + b2_ref[...]
    h = jnp.maximum(h, 0.0)
    # fc3 + relu
    h = jnp.dot(w3_ref[...], h.astype(bf), preferred_element_type=f32) + b3_ref[...]
    h = jnp.maximum(h, 0.0)
    # fc4 (64 -> 1): VPU multiply + sublane reduce (avoids an MXU pass with a
    # single useful row); result is already lane-dense (1, TB). Kept in f32.
    y = jnp.sum(h * w4_ref[...], axis=0, keepdims=True) + b4_ref[...]
    # sigmoid(y) * 10
    o_ref[...] = (jax.nn.sigmoid(y) * 10.0).astype(o_ref.dtype)


def _choose_batch_tile(batch, cap=8192):
    """Largest lane-aligned tile <= cap that minimizes padded-batch waste.

    Among 128-multiples, pick the tile minimizing cdiv(B, tb) * tb - B
    (no whole garbage tail tile), tie-broken by the largest tile (fewest
    grid steps -> amortizes the ~0.35 us per-step floor).  If that yields a
    single grid step, split it in two when it costs no extra padding so both
    TensorCores get work on v7x.
    """
    min_pad = pl.cdiv(batch, 128) * 128
    candidates = range(128, min(cap, min_pad) + 1, 128)

    def padded(tb):
        return pl.cdiv(batch, tb) * tb

    tb = min(candidates, key=lambda t: (padded(t), -t))
    if pl.cdiv(batch, tb) == 1:
        half = tb // 2
        if half >= 128 and half % 128 == 0 and padded(half) == padded(tb):
            tb = half
    return tb


def valnet_forward(x, params, *, batch_tile=None):
    """x: (B, S) float32.

    Params layout (PyTorch (out, in) convention, stored f32):
      w1 (64, S), w2 (64, 64), w3 (64, 64)
      b1, b2, b3 (64, 1);  w4 (64, 1) column;  b4 (1, 1)
    Returns (B, 1) float32 = sigmoid(fc4(relu(fc3(relu(fc2(relu(fc1(x)))))))) * 10.
    """
    B, S = x.shape
    tb = batch_tile or _choose_batch_tile(B)
    num_tiles = pl.cdiv(B, tb)
    b_pad = num_tiles * tb

    bf = jnp.bfloat16
    # One fused transpose + pad + cast: batch onto the lane axis, bf16 stream.
    xt = jnp.pad(x.T.astype(bf), ((0, 0), (0, b_pad - B)))

    # Matmul weights pre-cast to bf16 once; biases / fc4 column stay f32.
    w1, w2, w3 = (params[k].astype(bf) for k in ("w1", "w2", "w3"))
    b1, b2, b3 = params["b1"], params["b2"], params["b3"]
    w4, b4 = params["w4"], params["b4"]

    # Weights/biases: full-array blocks with a constant index_map -> DMA'd
    # once, VMEM-resident across all grid steps.
    resident = lambda a: pl.BlockSpec(a.shape, lambda i: (0, 0))

    flops = 2 * b_pad * (S * HIDDEN + 2 * HIDDEN * HIDDEN + HIDDEN) \
        + 4 * b_pad * HIDDEN  # bias adds + relus (advisory)
    bytes_accessed = (2 * S * b_pad + 4 * b_pad
                      + sum(v.size * v.dtype.itemsize
                            for v in (w1, b1, w2, b2, w3, b3, w4, b4)))

    out = pl.pallas_call(
        valnet_kernel,
        out_shape=jax.ShapeDtypeStruct((1, b_pad), jnp.float32),
        grid=(num_tiles,),
        in_specs=[
            pl.BlockSpec((S, tb), lambda i: (0, i)),        # bf16 x tile
            resident(w1), resident(b1),
            resident(w2), resident(b2),
            resident(w3), resident(b3),
            resident(w4), resident(b4),
        ],
        out_specs=pl.BlockSpec((1, tb), lambda i: (0, i)),  # lane-dense out
        compiler_params=pltpu.CompilerParams(
            dimension_semantics=("parallel",),
            vmem_limit_bytes=32 * 1024 * 1024,
        ),
        cost_estimate=pl.CostEstimate(
            flops=flops, transcendentals=b_pad,
            bytes_accessed=bytes_accessed),
    )(xt, w1, b1, w2, b2, w3, b3, w4, b4)

    return out[0, :B].reshape(B, 1)


def init_params(key, state_size):
    """Deterministic init mimicking PyTorch Linear default (+-1/sqrt(fan_in))."""
    shapes = {
        "w1": (HIDDEN, state_size), "b1": (HIDDEN, 1),
        "w2": (HIDDEN, HIDDEN),     "b2": (HIDDEN, 1),
        "w3": (HIDDEN, HIDDEN),     "b3": (HIDDEN, 1),
        "w4": (HIDDEN, 1),          "b4": (1, 1),
    }
    fan_in = {"1": state_size, "2": HIDDEN, "3": HIDDEN, "4": HIDDEN}
    params = {}
    for name, shape in shapes.items():
        key, sub = jax.random.split(key)
        bound = 1.0 / (fan_in[name[-1]] ** 0.5)
        params[name] = jax.random.uniform(sub, shape, jnp.float32, -bound, bound)
    return params


def valnet_ref_bf16(x, params):
    """Pure-JAX reference mirroring the kernel's bf16-at-the-dot casting."""
    bf = jnp.bfloat16
    h = x.T.astype(bf)
    for i in (1, 2, 3):
        w, b = params[f"w{i}"].astype(bf), params[f"b{i}"]
        h = jnp.dot(w, h.astype(bf), preferred_element_type=jnp.float32) + b
        h = jnp.maximum(h, 0.0)
    y = jnp.sum(h * params["w4"], axis=0, keepdims=True) + params["b4"]
    return (jax.nn.sigmoid(y) * 10.0).T


def valnet_ref_f32(x, params):
    """Full-f32 reference of the original PyTorch forward pass."""
    h = x
    for i in (1, 2, 3):
        h = jnp.maximum(h @ params[f"w{i}"].T + params[f"b{i}"].T, 0.0)
    y = h @ params["w4"] + params["b4"]
    return jax.nn.sigmoid(y) * 10.0


if __name__ == "__main__":
    key = jax.random.PRNGKey(0)
    key, kx, kp = jax.random.split(key, 3)

    batch = 8
    state_size = 32

    x = jax.random.normal(kx, (batch, state_size), jnp.float32)
    params = init_params(kp, state_size)

    out = jax.block_until_ready(valnet_forward(x, params))
    assert out.shape == (batch, 1), out.shape

    ref_bf = valnet_ref_bf16(x, params)   # same bf16-at-the-dot casting
    ref_f32 = valnet_ref_f32(x, params)   # original f32 semantics (loose check)
    assert jnp.allclose(out, ref_bf, atol=2e-3, rtol=2e-3), (out, ref_bf)
    assert jnp.allclose(out, ref_f32, atol=2.5e-1), (out, ref_f32)

    print("KERNEL_OK")
</pallas_src>

<mosaic_0001>
module attributes {stable_mosaic.version = 11 : i64} {
  func.func @valnet_kernel(%arg0: i32, %arg1: memref<32x128xbf16, #tpu.memory_space<vmem>>, %arg2: memref<64x32xbf16, #tpu.memory_space<vmem>>, %arg3: memref<64x1xf32, #tpu.memory_space<vmem>>, %arg4: memref<64x64xbf16, #tpu.memory_space<vmem>>, %arg5: memref<64x1xf32, #tpu.memory_space<vmem>>, %arg6: memref<64x64xbf16, #tpu.memory_space<vmem>>, %arg7: memref<64x1xf32, #tpu.memory_space<vmem>>, %arg8: memref<64x1xf32, #tpu.memory_space<vmem>>, %arg9: memref<1x1xf32, #tpu.memory_space<vmem>>, %arg10: memref<1x128xf32, #tpu.memory_space<vmem>>) attributes {dimension_semantics = [#tpu.dimension_semantics<parallel>], iteration_bounds = array<i64: 1>, scalar_prefetch = 0 : i64, scratch_operands = 0 : i64, tpu.core_type = #tpu.core_type<tc>, window_params = [{transform_indices = @transform_0, window_bounds = array<i64: 32, 128>}, {pipeline_mode = #tpu.pipeline_mode<synchronous>, transform_indices = @transform_1, window_bounds = array<i64: 64, 32>}, {pipeline_mode = #tpu.pipeline_mode<synchronous>, transform_indices = @transform_2, window_bounds = array<i64: 64, 1>}, {pipeline_mode = #tpu.pipeline_mode<synchronous>, transform_indices = @transform_3, window_bounds = array<i64: 64, 64>}, {pipeline_mode = #tpu.pipeline_mode<synchronous>, transform_indices = @transform_4, window_bounds = array<i64: 64, 1>}, {pipeline_mode = #tpu.pipeline_mode<synchronous>, transform_indices = @transform_5, window_bounds = array<i64: 64, 64>}, {pipeline_mode = #tpu.pipeline_mode<synchronous>, transform_indices = @transform_6, window_bounds = array<i64: 64, 1>}, {pipeline_mode = #tpu.pipeline_mode<synchronous>, transform_indices = @transform_7, window_bounds = array<i64: 64, 1>}, {pipeline_mode = #tpu.pipeline_mode<synchronous>, transform_indices = @transform_8, window_bounds = array<i64: 1, 1>}, {transform_indices = @transform_9, window_bounds = array<i64: 1, 128>}]} {
    %c0 = arith.constant 0 : index
    %c0_0 = arith.constant 0 : index
    %0 = vector.load %arg2[%c0, %c0_0] : memref<64x32xbf16, #tpu.memory_space<vmem>>, vector<64x32xbf16>
    %c0_1 = arith.constant 0 : index
    %c0_2 = arith.constant 0 : index
    %1 = vector.load %arg1[%c0_1, %c0_2] : memref<32x128xbf16, #tpu.memory_space<vmem>>, vector<32x128xbf16>
    %cst = arith.constant dense<0.000000e+00> : vector<64x128xf32>
    %2 = tpu.matmul %0, %1, %cst {dimension_numbers = #tpu.dot_dimension_numbers<[1], [0], [0], [1], [0, 0, 1, 1], [], []>} : vector<64x32xbf16>, vector<32x128xbf16>, vector<64x128xf32> -> vector<64x128xf32>
    %c0_3 = arith.constant 0 : index
    %c0_4 = arith.constant 0 : index
    %3 = vector.load %arg3[%c0_3, %c0_4] : memref<64x1xf32, #tpu.memory_space<vmem>>, vector<64x1xf32>
    %4 = vector.broadcast %3 : vector<64x1xf32> to vector<64x128xf32>
    %5 = arith.addf %2, %4 : vector<64x128xf32>
    %cst_5 = arith.constant 0.000000e+00 : f32
    %6 = vector.broadcast %cst_5 : f32 to vector<64x128xf32>
    %7 = arith.maximumf %5, %6 : vector<64x128xf32>
    %c0_6 = arith.constant 0 : index
    %c0_7 = arith.constant 0 : index
    %8 = vector.load %arg4[%c0_6, %c0_7] : memref<64x64xbf16, #tpu.memory_space<vmem>>, vector<64x64xbf16>
    %9 = arith.truncf %7 : vector<64x128xf32> to vector<64x128xbf16>
    %cst_8 = arith.constant dense<0.000000e+00> : vector<64x128xf32>
    %10 = tpu.matmul %8, %9, %cst_8 {dimension_numbers = #tpu.dot_dimension_numbers<[1], [0], [0], [1], [0, 0, 1, 1], [], []>} : vector<64x64xbf16>, vector<64x128xbf16>, vector<64x128xf32> -> vector<64x128xf32>
    %c0_9 = arith.constant 0 : index
    %c0_10 = arith.constant 0 : index
    %11 = vector.load %arg5[%c0_9, %c0_10] : memref<64x1xf32, #tpu.memory_space<vmem>>, vector<64x1xf32>
    %12 = vector.broadcast %11 : vector<64x1xf32> to vector<64x128xf32>
    %13 = arith.addf %10, %12 : vector<64x128xf32>
    %cst_11 = arith.constant 0.000000e+00 : f32
    %14 = vector.broadcast %cst_11 : f32 to vector<64x128xf32>
    %15 = arith.maximumf %13, %14 : vector<64x128xf32>
    %c0_12 = arith.constant 0 : index
    %c0_13 = arith.constant 0 : index
    %16 = vector.load %arg6[%c0_12, %c0_13] : memref<64x64xbf16, #tpu.memory_space<vmem>>, vector<64x64xbf16>
    %17 = arith.truncf %15 : vector<64x128xf32> to vector<64x128xbf16>
    %cst_14 = arith.constant dense<0.000000e+00> : vector<64x128xf32>
    %18 = tpu.matmul %16, %17, %cst_14 {dimension_numbers = #tpu.dot_dimension_numbers<[1], [0], [0], [1], [0, 0, 1, 1], [], []>} : vector<64x64xbf16>, vector<64x128xbf16>, vector<64x128xf32> -> vector<64x128xf32>
    %c0_15 = arith.constant 0 : index
    %c0_16 = arith.constant 0 : index
    %19 = vector.load %arg7[%c0_15, %c0_16] : memref<64x1xf32, #tpu.memory_space<vmem>>, vector<64x1xf32>
    %20 = vector.broadcast %19 : vector<64x1xf32> to vector<64x128xf32>
    %21 = arith.addf %18, %20 : vector<64x128xf32>
    %cst_17 = arith.constant 0.000000e+00 : f32
    %22 = vector.broadcast %cst_17 : f32 to vector<64x128xf32>
    %23 = arith.maximumf %21, %22 : vector<64x128xf32>
    %c0_18 = arith.constant 0 : index
    %c0_19 = arith.constant 0 : index
    %24 = vector.load %arg8[%c0_18, %c0_19] : memref<64x1xf32, #tpu.memory_space<vmem>>, vector<64x1xf32>
    %25 = vector.broadcast %24 : vector<64x1xf32> to vector<64x128xf32>
    %26 = arith.mulf %23, %25 : vector<64x128xf32>
    %cst_20 = arith.constant dense<0.000000e+00> : vector<128xf32>
    %27 = vector.multi_reduction <add>, %26, %cst_20 [0] : vector<64x128xf32> to vector<128xf32>
    %28 = vector.shape_cast %27 : vector<128xf32> to vector<1x128xf32>
    %c0_21 = arith.constant 0 : index
    %c0_22 = arith.constant 0 : index
    %29 = vector.load %arg9[%c0_21, %c0_22] : memref<1x1xf32, #tpu.memory_space<vmem>>, vector<1x1xf32>
    %30 = vector.broadcast %29 : vector<1x1xf32> to vector<1x128xf32>
    %31 = arith.addf %28, %30 : vector<1x128xf32>
    %32 = arith.negf %31 : vector<1x128xf32>
    %33 = math.exp %32 : vector<1x128xf32>
    %cst_23 = arith.constant 1.000000e+00 : f32
    %34 = vector.broadcast %cst_23 : f32 to vector<1x128xf32>
    %35 = arith.addf %34, %33 : vector<1x128xf32>
    %36 = arith.divf %34, %35 : vector<1x128xf32>
    %cst_24 = arith.constant 1.000000e+01 : f32
    %37 = vector.broadcast %cst_24 : f32 to vector<1x128xf32>
    %38 = arith.mulf %36, %37 : vector<1x128xf32>
    %c0_25 = arith.constant 0 : index
    %c0_26 = arith.constant 0 : index
    %39 = vector.load %arg10[%c0_25, %c0_26] : memref<1x128xf32, #tpu.memory_space<vmem>>, vector<1x128xf32>
    tpu.vector_store %arg10[%c0_25, %c0_26], %38 {strides = array<i32>} : memref<1x128xf32, #tpu.memory_space<vmem>>, vector<1x128xf32>,
    return
  }
  func.func @transform_0(%arg0: i32) -> (i32, i32) {
    %c0_i32 = arith.constant 0 : i32
    %c0_i32_0 = arith.constant 0 : i32
    return %c0_i32, %arg0 : i32, i32
  }
  func.func @transform_1(%arg0: i32) -> (i32, i32) {
    %c0_i32 = arith.constant 0 : i32
    %c0_i32_0 = arith.constant 0 : i32
    %c0_i32_1 = arith.constant 0 : i32
    return %c0_i32, %c0_i32_0 : i32, i32
  }
  func.func @transform_2(%arg0: i32) -> (i32, i32) {
    %c0_i32 = arith.constant 0 : i32
    %c0_i32_0 = arith.constant 0 : i32
    %c0_i32_1 = arith.constant 0 : i32
    return %c0_i32, %c0_i32_0 : i32, i32
  }
  func.func @transform_3(%arg0: i32) -> (i32, i32) {
    %c0_i32 = arith.constant 0 : i32
    %c0_i32_0 = arith.constant 0 : i32
    %c0_i32_1 = arith.constant 0 : i32
    return %c0_i32, %c0_i32_0 : i32, i32
  }
  func.func @transform_4(%arg0: i32) -> (i32, i32) {
    %c0_i32 = arith.constant 0 : i32
    %c0_i32_0 = arith.constant 0 : i32
    %c0_i32_1 = arith.constant 0 : i32
    return %c0_i32, %c0_i32_0 : i32, i32
  }
  func.func @transform_5(%arg0: i32) -> (i32, i32) {
    %c0_i32 = arith.constant 0 : i32
    %c0_i32_0 = arith.constant 0 : i32
    %c0_i32_1 = arith.constant 0 : i32
    return %c0_i32, %c0_i32_0 : i32, i32
  }
  func.func @transform_6(%arg0: i32) -> (i32, i32) {
    %c0_i32 = arith.constant 0 : i32
    %c0_i32_0 = arith.constant 0 : i32
    %c0_i32_1 = arith.constant 0 : i32
    return %c0_i32, %c0_i32_0 : i32, i32
  }
  func.func @transform_7(%arg0: i32) -> (i32, i32) {
    %c0_i32 = arith.constant 0 : i32
    %c0_i32_0 = arith.constant 0 : i32
    %c0_i32_1 = arith.constant 0 : i32
    return %c0_i32, %c0_i32_0 : i32, i32
  }
  func.func @transform_8(%arg0: i32) -> (i32, i32) {
    %c0_i32 = arith.constant 0 : i32
    %c0_i32_0 = arith.constant 0 : i32
    %c0_i32_1 = arith.constant 0 : i32
    return %c0_i32, %c0_i32_0 : i32, i32
  }
  func.func @transform_9(%arg0: i32) -> (i32, i32) {
    %c0_i32 = arith.constant 0 : i32
    %c0_i32_0 = arith.constant 0 : i32
    return %c0_i32, %arg0 : i32, i32
  }
}

</mosaic_0001>

<llo_original>
// kernel: tpu_custom_call.1
$region0: #{tpu_custom_call.1}
  #allocation0 [shape = 'u32[]', space=smem, size = 0x4, offset = 0x4, fixed_abs, tag = 'smem constant byte address 0x4 - core index']
  #allocation1 [shape = 'u32[144,128]{1,0:T(1,128)}', space=vmem, size = 0x12000, scoped, tag = 'internal scratch']
  #allocation2 [shape = 'f32[1,1]{1,0:T(1,128)S(1)}', space=vmem, size = 0x200, scoped, tag = 'scoped memory for tpu_custom_call.1']
  %s0 = inlined_call_operand.vmem [shape: bf16[32,128], index: 0, kind: input, shape index: {}]
  %s1 = inlined_call_operand.vmem [shape: bf16[64,32], index: 1, kind: input, shape index: {}]
  %s2 = inlined_call_operand.vmem [shape: f32[64,1], index: 2, kind: input, shape index: {}]
  %s3 = inlined_call_operand.vmem [shape: bf16[64,64], index: 3, kind: input, shape index: {}]
  %s4 = inlined_call_operand.vmem [shape: f32[64,1], index: 4, kind: input, shape index: {}]
  %s5 = inlined_call_operand.vmem [shape: bf16[64,64], index: 5, kind: input, shape index: {}]
  %s6 = inlined_call_operand.vmem [shape: f32[64,1], index: 6, kind: input, shape index: {}]
  %s7 = inlined_call_operand.vmem [shape: f32[64,1], index: 7, kind: input, shape index: {}]
  %s8 = inlined_call_operand.<no memory space> [shape: f32[1,1], index: 8, kind: input, shape index: {}]
  %s9 = inlined_call_operand.hbm [shape: f32[1,128], index: 9, kind: output, shape index: {}]
  %s10 = sld [smem:[#allocation0]]
  $region46: #{tpu_custom_call.1} parent=0
    _
  %s12 = ssub.s32 1, %s10
  %s13 = scalar_select 0, %s12, %s10
  %v14 = vstv %s8
  %15 = vst [vmem:[#allocation2] sm:$0x1] %v14
  $region1: #{tpu_custom_call.1} parent=0
    #allocation3 [shape = 'u8[512]{0}', space=vmem, size = 0x400, scoped, tag = 'output window, operand 0, single buffered']
    #allocation4 [shape = 's32[1]{0}', space=sflag, size = 0x4, scoped, tag = 'scoped memory for tpu_custom_call.1']
    %16 = vsyncpa [#allocation4], 0
    // Predicated region
    $region2: #{tpu_custom_call.1} parent=1 // pred_check
      _
    $region3: #{tpu_custom_call.1} parent=1 // pred_check_branch
      %18 = sbr.rel (0) target = $region5
    $region4: #{tpu_custom_call.1} parent=1 // pred_region
      _
    $region5: #{tpu_custom_call.1} parent=1 // pred_fallthru
      _
    // Predicated region
    $region6: #{tpu_custom_call.1} parent=1 // pred_check
      _
    $region7: #{tpu_custom_call.1} parent=1 // pred_check_branch
      %20 = sbr.rel (0) target = $region9
    $region8: #{tpu_custom_call.1} parent=1 // pred_region
      _
    $region9: #{tpu_custom_call.1} parent=1 // pred_fallthru
      _
    // Predicated region
    $region10: #{tpu_custom_call.1} parent=1 // pred_check
      _
    $region11: #{tpu_custom_call.1} parent=1 // pred_check_branch
      %22 = sbr.rel (0) target = $region13
    $region12: #{tpu_custom_call.1} parent=1 // pred_region
      _
    $region13: #{tpu_custom_call.1} parent=1 // pred_fallthru
      _
    // Predicated region
    $region14: #{tpu_custom_call.1} parent=1 // pred_check
      _
    $region15: #{tpu_custom_call.1} parent=1 // pred_check_branch
      %24 = sbr.rel (0) target = $region17
    $region16: #{tpu_custom_call.1} parent=1 // pred_region
      _
    $region17: #{tpu_custom_call.1} parent=1 // pred_fallthru
      _
    // Predicated region
    $region18: #{tpu_custom_call.1} parent=1 // pred_check
      _
    $region19: #{tpu_custom_call.1} parent=1 // pred_check_branch
      %26 = sbr.rel (0) target = $region21
    $region20: #{tpu_custom_call.1} parent=1 // pred_region
      _
    $region21: #{tpu_custom_call.1} parent=1 // pred_fallthru
      _
    // Predicated region
    $region22: #{tpu_custom_call.1} parent=1 // pred_check
      _
    $region23: #{tpu_custom_call.1} parent=1 // pred_check_branch
      %28 = sbr.rel (0) target = $region25
    $region24: #{tpu_custom_call.1} parent=1 // pred_region
      _
    $region25: #{tpu_custom_call.1} parent=1 // pred_fallthru
      _
    // Predicated region
    $region26: #{tpu_custom_call.1} parent=1 // pred_check
      _
    $region27: #{tpu_custom_call.1} parent=1 // pred_check_branch
      %30 = sbr.rel (0) target = $region29
    $region28: #{tpu_custom_call.1} parent=1 // pred_region
      _
    $region29: #{tpu_custom_call.1} parent=1 // pred_fallthru
      _
    // Predicated region
    $region30: #{tpu_custom_call.1} parent=1 // pred_check
      _
    $region31: #{tpu_custom_call.1} parent=1 // pred_check_branch
      %32 = sbr.rel (0) target = $region33
    $region32: #{tpu_custom_call.1} parent=1 // pred_region
      _
    $region33: #{tpu_custom_call.1} parent=1 // pred_fallthru
      _
    // Predicated region
    $region34: #{tpu_custom_call.1} parent=1 // pred_check
      _
    $region35: #{tpu_custom_call.1} parent=1 // pred_check_branch
      %34 = sbr.rel (0) target = $region37
    $region36: #{tpu_custom_call.1} parent=1 // pred_region
      _
    $region37: #{tpu_custom_call.1} parent=1 // pred_fallthru
      _
    %v36 = vld [vmem:[%s1] sm:$0xf]
    %v37 = vld [vmem:[%s1 + $0x4] sm:$0xf]
    %v38 = vld [vmem:[%s1 + $0x8] sm:$0xf]
    %v39 = vld [vmem:[%s1 + $0xc] sm:$0xf]
    %v40 = vld [vmem:[%s1 + $0x10] sm:$0xf]
    %v41 = vld [vmem:[%s1 + $0x14] sm:$0xf]
    %v42 = vld [vmem:[%s1 + $0x18] sm:$0xf]
    %v43 = vld [vmem:[%s1 + $0x1c] sm:$0xf]
    %v44 = vld [vmem:[%s0] sm:$0xf]
    %v45 = vld [vmem:[%s0 + $0x4] sm:$0xf]
    %v46 = vld [vmem:[%s0 + $0x8] sm:$0xf]
    %v47 = vld [vmem:[%s0 + $0xc] sm:$0xf]
    %v48 = vld [vmem:[%s2] sm:$0xff]
    %v49 = vld [vmem:[%s2 + $0x8] sm:$0xff]
    %v50 = vld [vmem:[%s2 + $0x10] sm:$0xff]
    %v51 = vld [vmem:[%s2 + $0x18] sm:$0xff]
    %v52 = vld [vmem:[%s2 + $0x20] sm:$0xff]
    %v53 = vld [vmem:[%s2 + $0x28] sm:$0xff]
    %v54 = vld [vmem:[%s2 + $0x30] sm:$0xff]
    %v55 = vld [vmem:[%s2 + $0x38] sm:$0xff]
    %57 = vset.pattern.permute.xlu0 0
    %58 = vperm.xlu0 %57, %v48
    %v59 = vpop.permute.xlu0 %58
    %62 = vset.pattern.permute.xlu0 0
    %63 = vperm.xlu0 %62, %v49
    %v64 = vpop.permute.xlu0 %63
    %67 = vset.pattern.permute.xlu0 0
    %68 = vperm.xlu0 %67, %v50
    %v69 = vpop.permute.xlu0 %68
    %72 = vset.pattern.permute.xlu0 0
    %73 = vperm.xlu0 %72, %v51
    %v74 = vpop.permute.xlu0 %73
    %77 = vset.pattern.permute.xlu0 0
    %78 = vperm.xlu0 %77, %v52
    %v79 = vpop.permute.xlu0 %78
    %82 = vset.pattern.permute.xlu0 0
    %83 = vperm.xlu0 %82, %v53
    %v84 = vpop.permute.xlu0 %83
    %87 = vset.pattern.permute.xlu0 0
    %88 = vperm.xlu0 %87, %v54
    %v89 = vpop.permute.xlu0 %88
    %92 = vset.pattern.permute.xlu0 0
    %93 = vperm.xlu0 %92, %v55
    %v94 = vpop.permute.xlu0 %93
    %v104 = vunpack.c.l.b16 %v36
    %v105 = vunpack.c.l.b16 %v37
    %v106 = vunpack.c.l.b16 %v38
    %v107 = vunpack.c.l.b16 %v39
    %v108 = vunpack.c.l.b16 %v40
    %v109 = vunpack.c.l.b16 %v41
    %v110 = vunpack.c.l.b16 %v42
    %v111 = vunpack.c.l.b16 %v43
    %v112 = vpack.c.b16 %v105, %v104
    %v113 = vpack.c.b16 %v107, %v106
    %v114 = vpack.c.b16 %v109, %v108
    %v115 = vpack.c.b16 %v111, %v110
    %v120 = vunpack.c.l.b16 %v44
    %v121 = vunpack.c.l.b16 %v45
    %v122 = vunpack.c.l.b16 %v46
    %v123 = vunpack.c.l.b16 %v47
    %v124 = vpack.c.b16 %v121, %v120
    %v125 = vpack.c.b16 %v123, %v122
    %vm128 = vcmask 261120
    %v130 = vsel %vm128, %v112, 0
    %v133 = vsel %vm128, %v113, 0
    %v136 = vsel %vm128, %v114, 0
    %v139 = vsel %vm128, %v115, 0
    %141 = vmatprep.subr.bf16.mxu0 0
    %142 = vmatpush1.bf16.msra.mxu0 %v124
    %143 = vmatprep.subr.bf16.mxu0 0
    %144 = vmatpush1.bf16.msra.mxu0 %v125
    %145 = vmatprep.subr.bf16.mxu0 0
    %146 = vmatpush1.bf16.msra.mxu0 0
    %147 = vmatprep.subr.bf16.mxu0 0
    %148 = vmatpush1.bf16.msra.mxu0 0
    %149 = vmatprep.subr.bf16.mxu0 0
    %150 = vmatpush1.bf16.msra.mxu0 0
    %151 = vmatprep.subr.bf16.mxu0 0
    %152 = vmatpush1.bf16.msra.mxu0 0
    %153 = vmatprep.subr.bf16.mxu0 0
    %154 = vmatpush1.bf16.msra.mxu0 0
    %155 = vmatprep.subr.bf16.mxu0 0
    %156 = vmatpush1.bf16.msra.mxu0 0
    %157 = vmatprep.subr.bf16.mxu0 0
    %158 = vmatpush1.bf16.msra.mxu0 0
    %159 = vmatprep.subr.bf16.mxu0 0
    %160 = vmatpush1.bf16.msra.mxu0 0
    %161 = vmatprep.subr.bf16.mxu0 0
    %162 = vmatpush1.bf16.msra.mxu0 0
    %163 = vmatprep.subr.bf16.mxu0 0
    %164 = vmatpush1.bf16.msra.mxu0 0
    %165 = vmatprep.subr.bf16.mxu0 0
    %166 = vmatpush1.bf16.msra.mxu0 0
    %167 = vmatprep.subr.bf16.mxu0 0
    %168 = vmatpush1.bf16.msra.mxu0 0
    %169 = vmatprep.subr.bf16.mxu0 0
    %170 = vmatpush1.bf16.msra.mxu0 0
    %171 = vmatprep.subr.bf16.mxu0 0
    %172 = vmatpush1.bf16.msra.mxu0 0
    %173 = vmatprep.mubr.bf16.mxu0 0
    %174 = vmatmul.mubr.bf16.gmra.mrb[0].mxu0 %v130
    %v175 = vpop.f32.mrb[0].mxu0
    %v176 = vadd.f32 %v59, %v175
    %v177 = vpop.f32.mrb[0].mxu0
    %v178 = vpop.f32.mrb[0].mxu0
    %v179 = vadd.f32 %v64, %v178
    %v180 = vpop.f32.mrb[0].mxu0
    %181 = vmatprep.mubr.bf16.mxu0 0
    %182 = vmatmul.mubr.bf16.gmra.mrb[0].mxu0 %v133
    %v183 = vpop.f32.mrb[0].mxu0
    %v184 = vadd.f32 %v69, %v183
    %v185 = vpop.f32.mrb[0].mxu0
    %v186 = vpop.f32.mrb[0].mxu0
    %v187 = vadd.f32 %v74, %v186
    %v188 = vpop.f32.mrb[0].mxu0
    %189 = vmatprep.mubr.bf16.mxu0 0
    %190 = vmatmul.mubr.bf16.gmra.mrb[0].mxu0 %v136
    %v191 = vpop.f32.mrb[0].mxu0
    %v192 = vadd.f32 %v79, %v191
    %v193 = vpop.f32.mrb[0].mxu0
    %v194 = vpop.f32.mrb[0].mxu0
    %v195 = vadd.f32 %v84, %v194
    %v196 = vpop.f32.mrb[0].mxu0
    %197 = vmatprep.mubr.bf16.mxu0 0
    %198 = vmatmul.mubr.bf16.gmra.mrb[0].mxu0 %v139
    %v199 = vpop.f32.mrb[0].mxu0
    %v200 = vadd.f32 %v89, %v199
    %v201 = vpop.f32.mrb[0].mxu0
    %v202 = vpop.f32.mrb[0].mxu0
    %v203 = vadd.f32 %v94, %v202
    %v204 = vpop.f32.mrb[0].mxu0
    %205 = vdwg.mxu0
    %v206 = vmax.f32 %v176, 0.0
    %v207 = vmax.f32 %v179, 0.0
    %v208 = vmax.f32 %v184, 0.0
    %v209 = vmax.f32 %v187, 0.0
    %v210 = vmax.f32 %v192, 0.0
    %v211 = vmax.f32 %v195, 0.0
    %v212 = vmax.f32 %v200, 0.0
    %v213 = vmax.f32 %v203, 0.0
    %v214 = vld [vmem:[%s3] sm:$0xf]
    %v215 = vld [vmem:[%s3 + $0x4] sm:$0xf]
    %v216 = vld [vmem:[%s3 + $0x8] sm:$0xf]
    %v217 = vld [vmem:[%s3 + $0xc] sm:$0xf]
    %v218 = vld [vmem:[%s3 + $0x10] sm:$0xf]
    %v219 = vld [vmem:[%s3 + $0x14] sm:$0xf]
    %v220 = vld [vmem:[%s3 + $0x18] sm:$0xf]
    %v221 = vld [vmem:[%s3 + $0x1c] sm:$0xf]
    %v222 = vpack.c.bf16 %v207, %v206
    %v223 = vpack.c.bf16 %v209, %v208
    %v224 = vpack.c.bf16 %v211, %v210
    %v225 = vpack.c.bf16 %v213, %v212
    %v226 = vld [vmem:[%s4] sm:$0xff]
    %v227 = vld [vmem:[%s4 + $0x8] sm:$0xff]
    %v228 = vld [vmem:[%s4 + $0x10] sm:$0xff]
    %v229 = vld [vmem:[%s4 + $0x18] sm:$0xff]
    %v230 = vld [vmem:[%s4 + $0x20] sm:$0xff]
    %v231 = vld [vmem:[%s4 + $0x28] sm:$0xff]
    %v232 = vld [vmem:[%s4 + $0x30] sm:$0xff]
    %v233 = vld [vmem:[%s4 + $0x38] sm:$0xff]
    %235 = vset.pattern.permute.xlu0 0
    %236 = vperm.xlu0 %235, %v226
    %v237 = vpop.permute.xlu0 %236
    %240 = vset.pattern.permute.xlu0 0
    %241 = vperm.xlu0 %240, %v227
    %v242 = vpop.permute.xlu0 %241
    %245 = vset.pattern.permute.xlu0 0
    %246 = vperm.xlu0 %245, %v228
    %v247 = vpop.permute.xlu0 %246
    %250 = vset.pattern.permute.xlu0 0
    %251 = vperm.xlu0 %250, %v229
    %v252 = vpop.permute.xlu0 %251
    %255 = vset.pattern.permute.xlu0 0
    %256 = vperm.xlu0 %255, %v230
    %v257 = vpop.permute.xlu0 %256
    %260 = vset.pattern.permute.xlu0 0
    %261 = vperm.xlu0 %260, %v231
    %v262 = vpop.permute.xlu0 %261
    %265 = vset.pattern.permute.xlu0 0
    %266 = vperm.xlu0 %265, %v232
    %v267 = vpop.permute.xlu0 %266
    %270 = vset.pattern.permute.xlu0 0
    %271 = vperm.xlu0 %270, %v233
    %v272 = vpop.permute.xlu0 %271
    %v282 = vunpack.c.l.b16 %v214
    %v283 = vunpack.c.l.b16 %v215
    %v284 = vunpack.c.l.b16 %v216
    %v285 = vunpack.c.l.b16 %v217
    %v286 = vunpack.c.l.b16 %v218
    %v287 = vunpack.c.l.b16 %v219
    %v288 = vunpack.c.l.b16 %v220
    %v289 = vunpack.c.l.b16 %v221
    %v290 = vpack.c.b16 %v283, %v282
    %v291 = vpack.c.b16 %v285, %v284
    %v292 = vpack.c.b16 %v287, %v286
    %v293 = vpack.c.b16 %v289, %v288
    %vm294 = vcmask 523264
    %v296 = vsel %vm294, %v290, 0
    %v299 = vsel %vm294, %v291, 0
    %v302 = vsel %vm294, %v292, 0
    %v305 = vsel %vm294, %v293, 0
    %307 = vmatprep.subr.bf16.mxu0 0
    %308 = vmatpush1.bf16.msra.mxu0 %v222
    %309 = vmatprep.subr.bf16.mxu0 0
    %310 = vmatpush1.bf16.msra.mxu0 %v223
    %311 = vmatprep.subr.bf16.mxu0 0
    %312 = vmatpush1.bf16.msra.mxu0 %v224
    %313 = vmatprep.subr.bf16.mxu0 0
    %314 = vmatpush1.bf16.msra.mxu0 %v225
    %315 = vmatprep.subr.bf16.mxu0 0
    %316 = vmatpush1.bf16.msra.mxu0 0
    %317 = vmatprep.subr.bf16.mxu0 0
    %318 = vmatpush1.bf16.msra.mxu0 0
    %319 = vmatprep.subr.bf16.mxu0 0
    %320 = vmatpush1.bf16.msra.mxu0 0
    %321 = vmatprep.subr.bf16.mxu0 0
    %322 = vmatpush1.bf16.msra.mxu0 0
    %323 = vmatprep.subr.bf16.mxu0 0
    %324 = vmatpush1.bf16.msra.mxu0 0
    %325 = vmatprep.subr.bf16.mxu0 0
    %326 = vmatpush1.bf16.msra.mxu0 0
    %327 = vmatprep.subr.bf16.mxu0 0
    %328 = vmatpush1.bf16.msra.mxu0 0
    %329 = vmatprep.subr.bf16.mxu0 0
    %330 = vmatpush1.bf16.msra.mxu0 0
    %331 = vmatprep.subr.bf16.mxu0 0
    %332 = vmatpush1.bf16.msra.mxu0 0
    %333 = vmatprep.subr.bf16.mxu0 0
    %334 = vmatpush1.bf16.msra.mxu0 0
    %335 = vmatprep.subr.bf16.mxu0 0
    %336 = vmatpush1.bf16.msra.mxu0 0
    %337 = vmatprep.subr.bf16.mxu0 0
    %338 = vmatpush1.bf16.msra.mxu0 0
    %339 = vmatprep.mubr.bf16.mxu0 0
    %340 = vmatmul.mubr.bf16.gmra.mrb[0].mxu0 %v296
    %v341 = vpop.f32.mrb[0].mxu0
    %v342 = vadd.f32 %v237, %v341
    %v343 = vpop.f32.mrb[0].mxu0
    %v344 = vpop.f32.mrb[0].mxu0
    %v345 = vadd.f32 %v242, %v344
    %v346 = vpop.f32.mrb[0].mxu0
    %347 = vmatprep.mubr.bf16.mxu0 0
    %348 = vmatmul.mubr.bf16.gmra.mrb[0].mxu0 %v299
    %v349 = vpop.f32.mrb[0].mxu0
    %v350 = vadd.f32 %v247, %v349
    %v351 = vpop.f32.mrb[0].mxu0
    %v352 = vpop.f32.mrb[0].mxu0
    %v353 = vadd.f32 %v252, %v352
    %v354 = vpop.f32.mrb[0].mxu0
    %355 = vmatprep.mubr.bf16.mxu0 0
    %356 = vmatmul.mubr.bf16.gmra.mrb[0].mxu0 %v302
    %v357 = vpop.f32.mrb[0].mxu0
    %v358 = vadd.f32 %v257, %v357
    %v359 = vpop.f32.mrb[0].mxu0
    %v360 = vpop.f32.mrb[0].mxu0
    %v361 = vadd.f32 %v262, %v360
    %v362 = vpop.f32.mrb[0].mxu0
    %363 = vmatprep.mubr.bf16.mxu0 0
    %364 = vmatmul.mubr.bf16.gmra.mrb[0].mxu0 %v305
    %v365 = vpop.f32.mrb[0].mxu0
    %v366 = vadd.f32 %v267, %v365
    %v367 = vpop.f32.mrb[0].mxu0
    %v368 = vpop.f32.mrb[0].mxu0
    %v369 = vadd.f32 %v272, %v368
    %v370 = vpop.f32.mrb[0].mxu0
    %371 = vdwg.mxu0
    %v372 = vmax.f32 %v342, 0.0
    %v373 = vmax.f32 %v345, 0.0
    %v374 = vmax.f32 %v350, 0.0
    %v375 = vmax.f32 %v353, 0.0
    %v376 = vmax.f32 %v358, 0.0
    %v377 = vmax.f32 %v361, 0.0
    %v378 = vmax.f32 %v366, 0.0
    %v379 = vmax.f32 %v369, 0.0
    %v380 = vld [vmem:[%s5] sm:$0xf]
    %v381 = vld [vmem:[%s5 + $0x4] sm:$0xf]
    %v382 = vld [vmem:[%s5 + $0x8] sm:$0xf]
    %v383 = vld [vmem:[%s5 + $0xc] sm:$0xf]
    %v384 = vld [vmem:[%s5 + $0x10] sm:$0xf]
    %v385 = vld [vmem:[%s5 + $0x14] sm:$0xf]
    %v386 = vld [vmem:[%s5 + $0x18] sm:$0xf]
    %v387 = vld [vmem:[%s5 + $0x1c] sm:$0xf]
    %v388 = vpack.c.bf16 %v373, %v372
    %v389 = vpack.c.bf16 %v375, %v374
    %v390 = vpack.c.bf16 %v377, %v376
    %v391 = vpack.c.bf16 %v379, %v378
    %v392 = vld [vmem:[%s6] sm:$0xff]
    %v393 = vld [vmem:[%s6 + $0x8] sm:$0xff]
    %v394 = vld [vmem:[%s6 + $0x10] sm:$0xff]
    %v395 = vld [vmem:[%s6 + $0x18] sm:$0xff]
    %v396 = vld [vmem:[%s6 + $0x20] sm:$0xff]
    %v397 = vld [vmem:[%s6 + $0x28] sm:$0xff]
    %v398 = vld [vmem:[%s6 + $0x30] sm:$0xff]
    %v399 = vld [vmem:[%s6 + $0x38] sm:$0xff]
    %401 = vset.pattern.permute.xlu0 0
    %402 = vperm.xlu0 %401, %v392
    %v403 = vpop.permute.xlu0 %402
    %406 = vset.pattern.permute.xlu0 0
    %407 = vperm.xlu0 %406, %v393
    %v408 = vpop.permute.xlu0 %407
    %411 = vset.pattern.permute.xlu0 0
    %412 = vperm.xlu0 %411, %v394
    %v413 = vpop.permute.xlu0 %412
    %416 = vset.pattern.permute.xlu0 0
    %417 = vperm.xlu0 %416, %v395
    %v418 = vpop.permute.xlu0 %417
    %421 = vset.pattern.permute.xlu0 0
    %422 = vperm.xlu0 %421, %v396
    %v423 = vpop.permute.xlu0 %422
    %426 = vset.pattern.permute.xlu0 0
    %427 = vperm.xlu0 %426, %v397
    %v428 = vpop.permute.xlu0 %427
    %431 = vset.pattern.permute.xlu0 0
    %432 = vperm.xlu0 %431, %v398
    %v433 = vpop.permute.xlu0 %432
    %436 = vset.pattern.permute.xlu0 0
    %437 = vperm.xlu0 %436, %v399
    %v438 = vpop.permute.xlu0 %437
    %v448 = vunpack.c.l.b16 %v380
    %v449 = vunpack.c.l.b16 %v381
    %v450 = vunpack.c.l.b16 %v382
    %v451 = vunpack.c.l.b16 %v383
    %v452 = vunpack.c.l.b16 %v384
    %v453 = vunpack.c.l.b16 %v385
    %v454 = vunpack.c.l.b16 %v386
    %v455 = vunpack.c.l.b16 %v387
    %v456 = vpack.c.b16 %v449, %v448
    %v457 = vpack.c.b16 %v451, %v450
    %v458 = vpack.c.b16 %v453, %v452
    %v459 = vpack.c.b16 %v455, %v454
    %v461 = vsel %vm294, %v456, 0
    %v464 = vsel %vm294, %v457, 0
    %v467 = vsel %vm294, %v458, 0
    %v470 = vsel %vm294, %v459, 0
    %472 = vmatprep.subr.bf16.mxu0 0
    %473 = vmatpush1.bf16.msra.mxu0 %v388
    %474 = vmatprep.subr.bf16.mxu0 0
    %475 = vmatpush1.bf16.msra.mxu0 %v389
    %476 = vmatprep.subr.bf16.mxu0 0
    %477 = vmatpush1.bf16.msra.mxu0 %v390
    %478 = vmatprep.subr.bf16.mxu0 0
    %479 = vmatpush1.bf16.msra.mxu0 %v391
    %480 = vmatprep.subr.bf16.mxu0 0
    %481 = vmatpush1.bf16.msra.mxu0 0
    %482 = vmatprep.subr.bf16.mxu0 0
    %483 = vmatpush1.bf16.msra.mxu0 0
    %484 = vmatprep.subr.bf16.mxu0 0
    %485 = vmatpush1.bf16.msra.mxu0 0
    %486 = vmatprep.subr.bf16.mxu0 0
    %487 = vmatpush1.bf16.msra.mxu0 0
    %488 = vmatprep.subr.bf16.mxu0 0
    %489 = vmatpush1.bf16.msra.mxu0 0
    %490 = vmatprep.subr.bf16.mxu0 0
    %491 = vmatpush1.bf16.msra.mxu0 0
    %492 = vmatprep.subr.bf16.mxu0 0
    %493 = vmatpush1.bf16.msra.mxu0 0
    %494 = vmatprep.subr.bf16.mxu0 0
    %495 = vmatpush1.bf16.msra.mxu0 0
    %496 = vmatprep.subr.bf16.mxu0 0
    %497 = vmatpush1.bf16.msra.mxu0 0
    %498 = vmatprep.subr.bf16.mxu0 0
    %499 = vmatpush1.bf16.msra.mxu0 0
    %500 = vmatprep.subr.bf16.mxu0 0
    %501 = vmatpush1.bf16.msra.mxu0 0
    %502 = vmatprep.subr.bf16.mxu0 0
    %503 = vmatpush1.bf16.msra.mxu0 0
    %504 = vmatprep.mubr.bf16.mxu0 0
    %505 = vmatmul.mubr.bf16.gmra.mrb[0].mxu0 %v461
    %v506 = vpop.f32.mrb[0].mxu0
    %v507 = vadd.f32 %v403, %v506
    %v508 = vpop.f32.mrb[0].mxu0
    %v509 = vpop.f32.mrb[0].mxu0
    %v510 = vadd.f32 %v408, %v509
    %v511 = vpop.f32.mrb[0].mxu0
    %512 = vmatprep.mubr.bf16.mxu0 0
    %513 = vmatmul.mubr.bf16.gmra.mrb[0].mxu0 %v464
    %v514 = vpop.f32.mrb[0].mxu0
    %v515 = vadd.f32 %v413, %v514
    %v516 = vpop.f32.mrb[0].mxu0
    %v517 = vpop.f32.mrb[0].mxu0
    %v518 = vadd.f32 %v418, %v517
    %v519 = vpop.f32.mrb[0].mxu0
    %520 = vmatprep.mubr.bf16.mxu0 0
    %521 = vmatmul.mubr.bf16.gmra.mrb[0].mxu0 %v467
    %v522 = vpop.f32.mrb[0].mxu0
    %v523 = vadd.f32 %v423, %v522
    %v524 = vpop.f32.mrb[0].mxu0
    %v525 = vpop.f32.mrb[0].mxu0
    %v526 = vadd.f32 %v428, %v525
    %v527 = vpop.f32.mrb[0].mxu0
    %528 = vmatprep.mubr.bf16.mxu0 0
    %529 = vmatmul.mubr.bf16.gmra.mrb[0].mxu0 %v470
    %v530 = vpop.f32.mrb[0].mxu0
    %v531 = vadd.f32 %v433, %v530
    %v532 = vpop.f32.mrb[0].mxu0
    %v533 = vpop.f32.mrb[0].mxu0
    %v534 = vadd.f32 %v438, %v533
    %v535 = vpop.f32.mrb[0].mxu0
    %536 = vdwg.mxu0
    %v537 = vmax.f32 %v507, 0.0
    %v538 = vmax.f32 %v510, 0.0
    %v539 = vmax.f32 %v515, 0.0
    %v540 = vmax.f32 %v518, 0.0
    %v541 = vmax.f32 %v523, 0.0
    %v542 = vmax.f32 %v526, 0.0
    %v543 = vmax.f32 %v531, 0.0
    %v544 = vmax.f32 %v534, 0.0
    %v545 = vld [vmem:[%s7] sm:$0xff]
    %v546 = vld [vmem:[%s7 + $0x8] sm:$0xff]
    %v547 = vld [vmem:[%s7 + $0x10] sm:$0xff]
    %v548 = vld [vmem:[%s7 + $0x18] sm:$0xff]
    %v549 = vld [vmem:[%s7 + $0x20] sm:$0xff]
    %v550 = vld [vmem:[%s7 + $0x28] sm:$0xff]
    %v551 = vld [vmem:[%s7 + $0x30] sm:$0xff]
    %v552 = vld [vmem:[%s7 + $0x38] sm:$0xff]
    %554 = vset.pattern.permute.xlu0 0
    %555 = vperm.xlu0 %554, %v545
    %v556 = vpop.permute.xlu0 %555
    %559 = vset.pattern.permute.xlu0 0
    %560 = vperm.xlu0 %559, %v546
    %v561 = vpop.permute.xlu0 %560
    %564 = vset.pattern.permute.xlu0 0
    %565 = vperm.xlu0 %564, %v547
    %v566 = vpop.permute.xlu0 %565
    %569 = vset.pattern.permute.xlu0 0
    %570 = vperm.xlu0 %569, %v548
    %v571 = vpop.permute.xlu0 %570
    %574 = vset.pattern.permute.xlu0 0
    %575 = vperm.xlu0 %574, %v549
    %v576 = vpop.permute.xlu0 %575
    %579 = vset.pattern.permute.xlu0 0
    %580 = vperm.xlu0 %579, %v550
    %v581 = vpop.permute.xlu0 %580
    %584 = vset.pattern.permute.xlu0 0
    %585 = vperm.xlu0 %584, %v551
    %v586 = vpop.permute.xlu0 %585
    %589 = vset.pattern.permute.xlu0 0
    %590 = vperm.xlu0 %589, %v552
    %v591 = vpop.permute.xlu0 %590
    %v593 = vmul.f32 %v537, %v556
    %v594 = vmul.f32 %v538, %v561
    %v595 = vmul.f32 %v539, %v566
    %v596 = vmul.f32 %v540, %v571
    %v597 = vmul.f32 %v541, %v576
    %v598 = vmul.f32 %v542, %v581
    %v599 = vmul.f32 %v543, %v586
    %v600 = vmul.f32 %v544, %v591
    %v601 = vadd.f32 %v593, %v594
    %v602 = vadd.f32 %v601, %v595
    %v603 = vadd.f32 %v602, %v596
    %v604 = vadd.f32 %v603, %v597
    %v605 = vadd.f32 %v604, %v598
    %v606 = vadd.f32 %v605, %v599
    %v607 = vadd.f32 %v606, %v600
    %v608 = vrot.slane %v607, 4
    %v609 = vadd.f32 %v607, %v608
    %v610 = vrot.slane %v609, 2
    %v611 = vadd.f32 %v609, %v610
    %v612 = vrot.slane %v611, 1
    %v613 = vadd.f32 %v611, %v612
    %v614 = vld [vmem:[#allocation2] sm:$0x1]
    %616 = vset.pattern.permute.xlu0 0
    %617 = vperm.xlu0 %616, %v614
    %v618 = vpop.permute.xlu0 %617
    %v620 = vlaneseq
    %v621 = vshrl.u32 %v620, 7
    %v622 = vsub.s32 0, %v621
    %v623 = vrot.slane %v618, %v622
    %v624 = vadd.f32 %v613, %v623
    %v625 = vxor.u32 %v624, 2147483648
    %v626 = vmul.f32 %v625, 1.442695
    %v627 = vpow.pop %v626
    %v628 = vadd.f32 %v627, 1.0
    %v629 = vrcp.pop %v628
    %v630 = vmul.f32 1.0, %v629
    %v631 = vmul.f32 %v630, 10.0
    %632 = vst [vmem:[#allocation3] sm:$0x1] %v631
    // Predicated region
    $region38: #{tpu_custom_call.1} parent=1 // pred_check
      _
    $region39: #{tpu_custom_call.1} parent=1 // pred_check_branch
      %634 = sbr.rel (0) target = $region41
    $region40: #{tpu_custom_call.1} parent=1 // pred_region
      %s636 = ssub.s32 16, 16
      %637 = vsyncadd [#allocation4], %s636
      %s639 = sshll.u32 [#allocation3], 4
      %s640 = int_to_ptr.vmem [resolvable:$true] %s639
      %642 = dma.vmem_to_hbm [thread:$0]  %s640, 16, %s9, [#allocation4]
    $region41: #{tpu_custom_call.1} parent=1 // pred_fallthru
      _
    // Predicated region
    $region42: #{tpu_custom_call.1} parent=1 // pred_check
      _
    $region43: #{tpu_custom_call.1} parent=1 // pred_check_branch
      %644 = sbr.rel (0) target = $region45
    $region44: #{tpu_custom_call.1} parent=1 // pred_region
      %645 = dma.done [#allocation4], 16
    $region45: #{tpu_custom_call.1} parent=1 // pred_fallthru
      _
    %646 = vsyncpa [#allocation4], 1

</llo_original>
